<compile_context>
chip_gen: v7x
topology: tpu7x:2x2x1
jax: 0.10.0
libtpu: 0.0.40
codegen_flags: <defaults>
</compile_context>

<pallas_src>
import math
import functools

import jax
import jax.numpy as jnp
from jax.experimental import pallas as pl
from jax.experimental.pallas import tpu as pltpu


def _round_up(a, m):
    return (a + m - 1) // m * m


# --------------------------------------------------------------------------- #
# Kernel: one (i, j, k) grid step of   out = x + (x @ W^T + b)
# --------------------------------------------------------------------------- #
def _lambda_residual_linear_kernel(x_ref, w_ref, b_ref, o_ref, acc_ref, *, tk, tn):
    """
    x_ref   : (tm, Hp_x) resident row-slab of x   (block (i, 0); 1 HBM pass / i)
    w_ref   : (tk, tn)   streamed tile of W^T     (block (k, j))
    b_ref   : (1,  tn)   bias tile                (block (0, j))
    o_ref   : (tm, tn)   output tile              (block (i, j))
    acc_ref : (tm, tn)   f32 VMEM accumulator (persists over the K axis)
    """
    j = pl.program_id(1)
    k = pl.program_id(2)

    @pl.when(k == 0)
    def _():
        acc_ref[...] = jnp.zeros_like(acc_ref)

    # MXU matmul with f32 accumulation.  LHS is sliced out of the resident x
    # slab (aligned lane-dim dynamic slice); W^T was prepared once, so there is
    # no in-kernel transpose.
    k_start = pl.multiple_of(k * tk, tk)
    acc_ref[...] += jnp.dot(
        x_ref[:, pl.ds(k_start, tk)], w_ref[...],
        preferred_element_type=jnp.float32,
    )

    # Epilogue only on the last K step: residual (from the same x slab) + bias,
    # one lane-dense store per output tile.
    @pl.when(k == pl.num_programs(2) - 1)
    def _():
        n_start = pl.multiple_of(j * tn, tn)
        res = x_ref[:, pl.ds(n_start, tn)].astype(jnp.float32)
        o_ref[...] = (
            acc_ref[...] + res + b_ref[...].astype(jnp.float32)
        ).astype(o_ref.dtype)


# --------------------------------------------------------------------------- #
# One-time parameter setup (do NOT call this in the per-step hot path).
# --------------------------------------------------------------------------- #
def prepare_lambda_linear_params(weight, bias, *, tn=1024, tk=512, dtype=None):
    """Transpose (PyTorch [out, in] -> [in, out]), optionally cast, and zero-pad
    the Linear parameters to tile multiples.  Padding is exact for
    matmul + bias + residual.  Use the SAME tn/tk here and in the forward call.
    """
    H_out, H_in = weight.shape
    assert H_out == H_in, "LambdaModule residual add requires a square Linear"
    H = H_in
    if dtype is None:
        dtype = weight.dtype

    w_t = jnp.asarray(weight, dtype).T          # [in, out]: no in-kernel .T
    b = jnp.asarray(bias, dtype)

    tk_eff = min(tk, _round_up(H, 128))
    tn_eff = min(tn, _round_up(H, 128))
    Hp_k = _round_up(H, tk_eff)                 # independent K / N padding
    Hp_n = _round_up(H, tn_eff)

    if Hp_k != H or Hp_n != H:
        w_p = jnp.zeros((Hp_k, Hp_n), dtype).at[:H, :H].set(w_t)
        b_p = jnp.zeros((1, Hp_n), dtype).at[0, :H].set(b)
    else:
        w_p = w_t
        b_p = b.reshape(1, H)
    return w_p, b_p


# --------------------------------------------------------------------------- #
# Forward wrapper (hot path).
# --------------------------------------------------------------------------- #
@functools.partial(
    jax.jit,
    static_argnames=("tm", "tn", "tk", "force_pallas", "vmem_budget_bytes"),
)
def lambda_module_forward(x, w_t_p, b_p, *, tm=512, tn=1024, tk=512,
                          force_pallas=False,
                          vmem_budget_bytes=40 * 1024 * 1024):
    """Fused forward of LambdaModule(Linear(H, H), lambda x, y: x + y).

    x      : [B, H]
    w_t_p  : [Hp_k, Hp_n]  pre-transposed, pre-padded weight (from prepare_*)
    b_p    : [1, Hp_n]     pre-padded bias                   (from prepare_*)
    returns [B, H] in x.dtype
    """
    B, H = x.shape
    Hp_k, Hp_n = w_t_p.shape
    out_dtype = x.dtype
    compute_dtype = w_t_p.dtype

    # Small-problem fast path: padding + ~0.35us/grid-step overhead make the
    # kernel a loss below a few hundred in each dim; let XLA fuse it instead.
    if not force_pallas and (H < 512 or B * H < 64 * 512):
        y = jnp.dot(x.astype(compute_dtype), w_t_p[:H, :H],
                    preferred_element_type=jnp.float32)
        return (x.astype(jnp.float32) + y
                + b_p[0, :H].astype(jnp.float32)).astype(out_dtype)

    # ---- tile selection ------------------------------------------------------
    tm = min(tm, _round_up(B, 8))
    tk = min(tk, Hp_k)
    tn = min(tn, Hp_n)
    assert Hp_k % tk == 0 and Hp_n % tn == 0, (
        "tn/tk must match the values passed to prepare_lambda_linear_params")

    # v7x has 2 TensorCores: if both parallel grid axes collapse to 1, split N.
    if pl.cdiv(B, tm) == 1 and Hp_n // tn == 1 and tn % 256 == 0:
        tn //= 2

    # VMEM budget (v7x: 64 MiB physical per TC).  The resident x slab is
    # double-buffered at 2*tm*Hp_x*itemsize; shrink tm until everything fits.
    Hp_x = max(Hp_k, Hp_n)
    cb = jnp.dtype(compute_dtype).itemsize
    ob = jnp.dtype(out_dtype).itemsize

    def _footprint(tm_):
        return (2 * tm_ * Hp_x * cb          # x row-slab (double-buffered)
                + 2 * tk * tn * cb           # W^T tile   (double-buffered)
                + 2 * tn * cb                # bias tile
                + 2 * tm_ * tn * ob          # output tile
                + tm_ * tn * 4)              # f32 accumulator

    while _footprint(tm) > vmem_budget_bytes and tm > 8:
        tm = max(8, _round_up(tm // 2, 8))

    Bp = _round_up(B, tm)

    # ---- pad activations (zero padding is exact for matmul+bias+residual) ----
    x_k = x.astype(compute_dtype)
    if Bp != B or Hp_x != H:
        x_k = jnp.zeros((Bp, Hp_x), compute_dtype).at[:B, :H].set(x_k)

    grid = (Bp // tm, Hp_n // tn, Hp_k // tk)
    kernel = functools.partial(_lambda_residual_linear_kernel, tk=tk, tn=tn)

    cost = pl.CostEstimate(
        flops=2 * B * H * H,
        transcendentals=0,
        bytes_accessed=cb * (B * H + H * H + H) + ob * B * H,
    )

    out_p = pl.pallas_call(
        kernel,
        out_shape=jax.ShapeDtypeStruct((Bp, Hp_n), out_dtype),
        grid_spec=pltpu.PrefetchScalarGridSpec(
            num_scalar_prefetch=0,
            grid=grid,
            in_specs=[
                # x row-slab: resident across (j, k) -> one HBM pass per i.
                pl.BlockSpec((tm, Hp_x), lambda i, j, k: (i, 0)),
                # W^T tile: the only operand streamed through the K loop.
                pl.BlockSpec((tk, tn), lambda i, j, k: (k, j)),
                # bias tile.
                pl.BlockSpec((1, tn), lambda i, j, k: (0, j)),
            ],
            out_specs=pl.BlockSpec((tm, tn), lambda i, j, k: (i, j)),
            scratch_shapes=[pltpu.VMEM((tm, tn), jnp.float32)],
        ),
        compiler_params=pltpu.CompilerParams(
            dimension_semantics=("parallel", "parallel", "arbitrary"),
            vmem_limit_bytes=64 * 1024 * 1024,
        ),
        cost_estimate=cost,
    )(x_k, w_t_p, b_p)

    return out_p[:B, :H]


if __name__ == "__main__":
    key = jax.random.PRNGKey(0)

    # --- Demo 1: small shape (batch=8, hidden=32), force the Pallas path ------
    k_x, k_w, k_b = jax.random.split(key, 3)
    batch, hidden = 8, 32
    x = jax.random.normal(k_x, (batch, hidden), dtype=jnp.float32)
    weight = jax.random.normal(k_w, (hidden, hidden), dtype=jnp.float32) * 0.05
    bias = jax.random.normal(k_b, (hidden,), dtype=jnp.float32) * 0.05

    w_p, b_p = prepare_lambda_linear_params(weight, bias)       # one-time setup
    ref = x + (x @ weight.T + bias)

    out = jax.block_until_ready(lambda_module_forward(x, w_p, b_p,
                                                      force_pallas=True))
    assert out.shape == (batch, hidden)
    assert jnp.allclose(out, ref, atol=1e-5, rtol=1e-5), "mismatch (pallas, small)"

    # Fast path (XLA) on the same tiny shape must agree as well.
    out_fp = jax.block_until_ready(lambda_module_forward(x, w_p, b_p))
    assert jnp.allclose(out_fp, ref, atol=1e-5, rtol=1e-5), "mismatch (fast path)"

    # --- Demo 2: multi-tile accumulator path (grid = (2, 2, 2)) ---------------
    b2, h2 = 16, 256
    k_x2, k_w2, k_b2 = jax.random.split(jax.random.PRNGKey(1), 3)
    x2 = jax.random.normal(k_x2, (b2, h2), dtype=jnp.float32)
    w2 = jax.random.normal(k_w2, (h2, h2), dtype=jnp.float32) * 0.05
    bi2 = jax.random.normal(k_b2, (h2,), dtype=jnp.float32) * 0.05

    w2_p, b2_p = prepare_lambda_linear_params(w2, bi2, tn=128, tk=128)
    out2 = jax.block_until_ready(
        lambda_module_forward(x2, w2_p, b2_p, tm=8, tn=128, tk=128,
                              force_pallas=True))
    ref2 = x2 + (x2 @ w2.T + bi2)
    assert out2.shape == (b2, h2)
    assert jnp.allclose(out2, ref2, atol=1e-4, rtol=1e-4), "mismatch (tiled)"

    # --- Demo 3: ragged shape exercising the zero-padding path ----------------
    b3, h3 = 10, 200
    k_x3, k_w3, k_b3 = jax.random.split(jax.random.PRNGKey(2), 3)
    x3 = jax.random.normal(k_x3, (b3, h3), dtype=jnp.float32)
    w3 = jax.random.normal(k_w3, (h3, h3), dtype=jnp.float32) * 0.05
    bi3 = jax.random.normal(k_b3, (h3,), dtype=jnp.float32) * 0.05

    w3_p, b3_p = prepare_lambda_linear_params(w3, bi3, tn=128, tk=128)
    out3 = jax.block_until_ready(
        lambda_module_forward(x3, w3_p, b3_p, tm=8, tn=128, tk=128,
                              force_pallas=True))
    ref3 = x3 + (x3 @ w3.T + bi3)
    assert out3.shape == (b3, h3)
    assert jnp.allclose(out3, ref3, atol=1e-4, rtol=1e-4), "mismatch (padded)"

    print("KERNEL_OK")
</pallas_src>

<mosaic_0001>
module attributes {stable_mosaic.version = 11 : i64} {
  func.func @_lambda_residual_linear_kernel(%arg0: i32, %arg1: i32, %arg2: i32, %arg3: memref<8x128xf32, #tpu.memory_space<vmem>>, %arg4: memref<128x128xf32, #tpu.memory_space<vmem>>, %arg5: memref<1x128xf32, #tpu.memory_space<vmem>>, %arg6: memref<8x128xf32, #tpu.memory_space<vmem>>, %arg7: memref<8x128xf32, #tpu.memory_space<vmem>>) attributes {dimension_semantics = [#tpu.dimension_semantics<parallel>, #tpu.dimension_semantics<parallel>, #tpu.dimension_semantics<arbitrary>], iteration_bounds = array<i64: 1, 1, 1>, scalar_prefetch = 0 : i64, scratch_operands = 1 : i64, tpu.core_type = #tpu.core_type<tc>, window_params = [{transform_indices = @transform_0, window_bounds = array<i64: 8, 128>}, {transform_indices = @transform_1, window_bounds = array<i64: 128, 128>}, {transform_indices = @transform_2, window_bounds = array<i64: 1, 128>}, {transform_indices = @transform_3, window_bounds = array<i64: 8, 128>}]} {
    %c0_i32 = arith.constant 0 : i32
    %0 = arith.cmpi eq, %arg2, %c0_i32 : i32
    %1 = arith.extui %0 : i1 to i32
    %c0_i32_0 = arith.constant 0 : i32
    %2 = arith.cmpi ne, %1, %c0_i32_0 : i32
    scf.if %2 {
      %cst_9 = arith.constant 0.000000e+00 : f32
      %15 = vector.broadcast %cst_9 : f32 to vector<8x128xf32>
      %c0_10 = arith.constant 0 : index
      %c0_11 = arith.constant 0 : index
      %16 = vector.load %arg7[%c0_10, %c0_11] : memref<8x128xf32, #tpu.memory_space<vmem>>, vector<8x128xf32>
      tpu.vector_store %arg7[%c0_10, %c0_11], %15 {strides = array<i32>} : memref<8x128xf32, #tpu.memory_space<vmem>>, vector<8x128xf32>,
    } else {
    }
    %c128_i32 = arith.constant 128 : i32
    %3 = arith.muli %arg2, %c128_i32 : i32
    %4 = tpu.assume_multiple %3, 128 : i32
    %c0 = arith.constant 0 : index
    %c0_1 = arith.constant 0 : index
    %5 = vector.load %arg7[%c0, %c0_1] : memref<8x128xf32, #tpu.memory_space<vmem>>, vector<8x128xf32>
    %c0_2 = arith.constant 0 : index
    %6 = arith.index_cast %4 : i32 to index
    %7 = vector.load %arg3[%c0_2, %6] : memref<8x128xf32, #tpu.memory_space<vmem>>, vector<8x128xf32>
    %c0_3 = arith.constant 0 : index
    %c0_4 = arith.constant 0 : index
    %8 = vector.load %arg4[%c0_3, %c0_4] : memref<128x128xf32, #tpu.memory_space<vmem>>, vector<128x128xf32>
    %cst = arith.constant dense<0.000000e+00> : vector<8x128xf32>
    %9 = tpu.matmul %7, %8, %cst {dimension_numbers = #tpu.dot_dimension_numbers<[1], [0], [0], [1], [0, 0, 1, 1], [], []>} : vector<8x128xf32>, vector<128x128xf32>, vector<8x128xf32> -> vector<8x128xf32>
    %10 = arith.addf %5, %9 : vector<8x128xf32>
    %c0_5 = arith.constant 0 : index
    %c0_6 = arith.constant 0 : index
    %11 = vector.load %arg7[%c0_5, %c0_6] : memref<8x128xf32, #tpu.memory_space<vmem>>, vector<8x128xf32>
    tpu.vector_store %arg7[%c0_5, %c0_6], %10 {strides = array<i32>} : memref<8x128xf32, #tpu.memory_space<vmem>>, vector<8x128xf32>,
    %c0_i32_7 = arith.constant 0 : i32
    %12 = arith.cmpi eq, %arg2, %c0_i32_7 : i32
    %13 = arith.extui %12 : i1 to i32
    %c0_i32_8 = arith.constant 0 : i32
    %14 = arith.cmpi ne, %13, %c0_i32_8 : i32
    scf.if %14 {
      %c128_i32_9 = arith.constant 128 : i32
      %15 = arith.muli %arg1, %c128_i32_9 : i32
      %16 = tpu.assume_multiple %15, 128 : i32
      %c0_10 = arith.constant 0 : index
      %17 = arith.index_cast %16 : i32 to index
      %18 = vector.load %arg3[%c0_10, %17] : memref<8x128xf32, #tpu.memory_space<vmem>>, vector<8x128xf32>
      %c0_11 = arith.constant 0 : index
      %c0_12 = arith.constant 0 : index
      %19 = vector.load %arg7[%c0_11, %c0_12] : memref<8x128xf32, #tpu.memory_space<vmem>>, vector<8x128xf32>
      %20 = arith.addf %19, %18 : vector<8x128xf32>
      %c0_13 = arith.constant 0 : index
      %c0_14 = arith.constant 0 : index
      %21 = vector.load %arg5[%c0_13, %c0_14] : memref<1x128xf32, #tpu.memory_space<vmem>>, vector<1x128xf32>
      %22 = vector.broadcast %21 : vector<1x128xf32> to vector<8x128xf32>
      %23 = arith.addf %20, %22 : vector<8x128xf32>
      %c0_15 = arith.constant 0 : index
      %c0_16 = arith.constant 0 : index
      %24 = vector.load %arg6[%c0_15, %c0_16] : memref<8x128xf32, #tpu.memory_space<vmem>>, vector<8x128xf32>
      tpu.vector_store %arg6[%c0_15, %c0_16], %23 {strides = array<i32>} : memref<8x128xf32, #tpu.memory_space<vmem>>, vector<8x128xf32>,
    } else {
    }
    return
  }
  func.func @transform_0(%arg0: i32, %arg1: i32, %arg2: i32) -> (i32, i32) {
    %c0_i32 = arith.constant 0 : i32
    %c0_i32_0 = arith.constant 0 : i32
    return %arg0, %c0_i32 : i32, i32
  }
  func.func @transform_1(%arg0: i32, %arg1: i32, %arg2: i32) -> (i32, i32) {
    %c0_i32 = arith.constant 0 : i32
    return %arg2, %arg1 : i32, i32
  }
  func.func @transform_2(%arg0: i32, %arg1: i32, %arg2: i32) -> (i32, i32) {
    %c0_i32 = arith.constant 0 : i32
    %c0_i32_0 = arith.constant 0 : i32
    return %c0_i32, %arg1 : i32, i32
  }
  func.func @transform_3(%arg0: i32, %arg1: i32, %arg2: i32) -> (i32, i32) {
    %c0_i32 = arith.constant 0 : i32
    return %arg0, %arg1 : i32, i32
  }
}

</mosaic_0001>

<llo_original>
// kernel: lambda_module_forward.1
$region0: #{lambda_module_forward.1}
  #allocation0 [shape = 'u32[]', space=smem, size = 0x4, offset = 0x4, fixed_abs, tag = 'smem constant byte address 0x4 - core index']
  #allocation1 [shape = 'u32[144,128]{1,0:T(1,128)}', space=vmem, size = 0x12000, scoped, tag = 'internal scratch']
  #allocation2 [shape = 'f32[8,128]{1,0:T(8,128)}', space=vmem, size = 0x1000, scoped, tag = 'scratch operand']
  %s0 = inlined_call_operand.hbm [shape: f32[8,128], index: 0, kind: input, shape index: {}]
  %s1 = inlined_call_operand.hbm [shape: f32[128,128], index: 1, kind: input, shape index: {}]
  %s2 = inlined_call_operand.hbm [shape: f32[1,128], index: 2, kind: input, shape index: {}]
  %s3 = inlined_call_operand.hbm [shape: f32[8,128], index: 3, kind: output, shape index: {}]
  %s4 = sld [smem:[#allocation0]]
  $region42: #{lambda_module_forward.1} parent=0
    _
  %s6 = ssub.s32 1, %s4
  %s7 = scalar_select 0, %s6, %s4
  $region1: #{lambda_module_forward.1} parent=0
    #allocation3 [shape = 'u8[4096]{0}', space=vmem, size = 0x1000, scoped, tag = 'input window, operand 0, single buffered']
    #allocation4 [shape = 's32[1]{0}', space=sflag, size = 0x4, scoped, tag = 'scoped memory for lambda_module_forward.1']
    #allocation5 [shape = 's32[1]{0}', space=sflag, size = 0x4, scoped, tag = 'scoped memory for lambda_module_forward.1']
    #allocation6 [shape = 'u8[65536]{0}', space=vmem, size = 0x10000, scoped, tag = 'input window, operand 1, single buffered']
    #allocation7 [shape = 's32[1]{0}', space=sflag, size = 0x4, scoped, tag = 'scoped memory for lambda_module_forward.1']
    #allocation8 [shape = 'u8[512]{0}', space=vmem, size = 0x400, scoped, tag = 'input window, operand 2, single buffered']
    #allocation9 [shape = 'u8[4096]{0}', space=vmem, size = 0x1000, scoped, tag = 'output window, operand 0, single buffered']
    %8 = vsyncpa [#allocation4], 0
    %9 = vsyncpa [#allocation7], 0
    %10 = vsyncpa [#allocation5], 0
    // Predicated region
    $region2: #{lambda_module_forward.1} parent=1 // pred_check
      _
    $region3: #{lambda_module_forward.1} parent=1 // pred_check_branch
      %12 = sbr.rel (0) target = $region5
    $region4: #{lambda_module_forward.1} parent=1 // pred_region
      %s14 = ssub.s32 128, 128
      %15 = vsyncadd [#allocation4], %s14
      %s17 = sshll.u32 [#allocation3], 4
      %s18 = int_to_ptr.vmem [resolvable:$true] %s17
      %20 = dma.hbm_to_vmem [thread:$0]  %s0, 128, %s18, [#allocation4]
    $region5: #{lambda_module_forward.1} parent=1 // pred_fallthru
      _
    // Predicated region
    $region6: #{lambda_module_forward.1} parent=1 // pred_check
      _
    $region7: #{lambda_module_forward.1} parent=1 // pred_check_branch
      %22 = sbr.rel (0) target = $region9
    $region8: #{lambda_module_forward.1} parent=1 // pred_region
      %s24 = ssub.s32 2048, 2048
      %25 = vsyncadd [#allocation7], %s24
      %s26 = sshll.u32 [#allocation6], 4
      %s27 = int_to_ptr.vmem [resolvable:$true] %s26
      %32 = dma.hbm_to_vmem [thread:$0]  %s1, 2048, %s27, [#allocation7], 128, 128, 8
    $region9: #{lambda_module_forward.1} parent=1 // pred_fallthru
      _
    // Predicated region
    $region10: #{lambda_module_forward.1} parent=1 // pred_check
      _
    $region11: #{lambda_module_forward.1} parent=1 // pred_check_branch
      %34 = sbr.rel (0) target = $region13
    $region12: #{lambda_module_forward.1} parent=1 // pred_region
      %s36 = ssub.s32 16, 16
      %37 = vsyncadd [#allocation7], %s36
      %s39 = sshll.u32 [#allocation8], 4
      %s40 = int_to_ptr.vmem [resolvable:$true] %s39
      %42 = dma.hbm_to_vmem [thread:$0]  %s2, 16, %s40, [#allocation7]
    $region13: #{lambda_module_forward.1} parent=1 // pred_fallthru
      _
    // Predicated region
    $region14: #{lambda_module_forward.1} parent=1 // pred_check
      _
    $region15: #{lambda_module_forward.1} parent=1 // pred_check_branch
      %44 = sbr.rel (0) target = $region17
    $region16: #{lambda_module_forward.1} parent=1 // pred_region
      %45 = dma.done [#allocation4], 128
    $region17: #{lambda_module_forward.1} parent=1 // pred_fallthru
      _
    // Predicated region
    $region18: #{lambda_module_forward.1} parent=1 // pred_check
      _
    $region19: #{lambda_module_forward.1} parent=1 // pred_check_branch
      %47 = sbr.rel (0) target = $region21
    $region20: #{lambda_module_forward.1} parent=1 // pred_region
      %48 = dma.done [#allocation7], 2048
    $region21: #{lambda_module_forward.1} parent=1 // pred_fallthru
      _
    // Predicated region
    $region22: #{lambda_module_forward.1} parent=1 // pred_check
      _
    $region23: #{lambda_module_forward.1} parent=1 // pred_check_branch
      %50 = sbr.rel (0) target = $region25
    $region24: #{lambda_module_forward.1} parent=1 // pred_region
      %51 = dma.done [#allocation7], 16
    $region25: #{lambda_module_forward.1} parent=1 // pred_fallthru
      _
    %p52 = scmp.eq.s32.totalorder 0, 0
    // Predicated region
    $region26: #{lambda_module_forward.1} parent=1 // pred_check
      %p53 = pneg %p52
    $region27: #{lambda_module_forward.1} parent=1 // pred_check_branch
      %55 = sbr.rel (%p53) target = $region29
    $region28: #{lambda_module_forward.1} parent=1 // pred_region
      %56 = vst [vmem:[#allocation2] sm:$0xff] 0.0
    $region29: #{lambda_module_forward.1} parent=1 // pred_fallthru
      _
    %s57 = smul.u32 0, 128
    %v58 = vld [vmem:[#allocation2] sm:$0xff]
    %s59 = sshra.s32 %s57, 7
    %s60 = sand.u32 %s57, 127
    %s61 = scalar_lea.vmem [#allocation3], %s59
    %v62 = vld [vmem:[%s61] sm:$0xff]
    %v63 = vld [vmem:[#allocation6] sm:$0xff]
    %v64 = vld [vmem:[#allocation6 + $0x8] sm:$0xff]
    %v65 = vld [vmem:[#allocation6 + $0x10] sm:$0xff]
    %v66 = vld [vmem:[#allocation6 + $0x18] sm:$0xff]
    %v67 = vld [vmem:[#allocation6 + $0x20] sm:$0xff]
    %v68 = vld [vmem:[#allocation6 + $0x28] sm:$0xff]
    %v69 = vld [vmem:[#allocation6 + $0x30] sm:$0xff]
    %v70 = vld [vmem:[#allocation6 + $0x38] sm:$0xff]
    %v71 = vld [vmem:[#allocation6 + $0x40] sm:$0xff]
    %v72 = vld [vmem:[#allocation6 + $0x48] sm:$0xff]
    %v73 = vld [vmem:[#allocation6 + $0x50] sm:$0xff]
    %v74 = vld [vmem:[#allocation6 + $0x58] sm:$0xff]
    %v75 = vld [vmem:[#allocation6 + $0x60] sm:$0xff]
    %v76 = vld [vmem:[#allocation6 + $0x68] sm:$0xff]
    %v77 = vld [vmem:[#allocation6 + $0x70] sm:$0xff]
    %v78 = vld [vmem:[#allocation6 + $0x78] sm:$0xff]
    %79 = vmatprep.subr.mxu0 0.0
    %80 = vmatpush1.msra.mxu0 %v63
    %81 = vmatprep.subr.mxu0 0.0
    %82 = vmatpush1.msra.mxu0 %v64
    %83 = vmatprep.subr.mxu0 0.0
    %84 = vmatpush1.msra.mxu0 %v65
    %85 = vmatprep.subr.mxu0 0.0
    %86 = vmatpush1.msra.mxu0 %v66
    %87 = vmatprep.subr.mxu0 0.0
    %88 = vmatpush1.msra.mxu0 %v67
    %89 = vmatprep.subr.mxu0 0.0
    %90 = vmatpush1.msra.mxu0 %v68
    %91 = vmatprep.subr.mxu0 0.0
    %92 = vmatpush1.msra.mxu0 %v69
    %93 = vmatprep.subr.mxu0 0.0
    %94 = vmatpush1.msra.mxu0 %v70
    %95 = vmatprep.subr.mxu0 0.0
    %96 = vmatpush1.msra.mxu0 %v71
    %97 = vmatprep.subr.mxu0 0.0
    %98 = vmatpush1.msra.mxu0 %v72
    %99 = vmatprep.subr.mxu0 0.0
    %100 = vmatpush1.msra.mxu0 %v73
    %101 = vmatprep.subr.mxu0 0.0
    %102 = vmatpush1.msra.mxu0 %v74
    %103 = vmatprep.subr.mxu0 0.0
    %104 = vmatpush1.msra.mxu0 %v75
    %105 = vmatprep.subr.mxu0 0.0
    %106 = vmatpush1.msra.mxu0 %v76
    %107 = vmatprep.subr.mxu0 0.0
    %108 = vmatpush1.msra.mxu0 %v77
    %109 = vmatprep.subr.mxu0 0.0
    %110 = vmatpush1.msra.mxu0 %v78
    %111 = vmatprep.subr.mxu0 0.0
    %112 = vmatpush1.msra.mxu0 0.0
    %113 = vmatprep.subr.mxu0 0.0
    %114 = vmatpush1.msra.mxu0 0.0
    %115 = vmatprep.subr.mxu0 0.0
    %116 = vmatpush1.msra.mxu0 0.0
    %117 = vmatprep.subr.mxu0 0.0
    %118 = vmatpush1.msra.mxu0 0.0
    %119 = vmatprep.subr.mxu0 0.0
    %120 = vmatpush1.msra.mxu0 0.0
    %121 = vmatprep.subr.mxu0 0.0
    %122 = vmatpush1.msra.mxu0 0.0
    %123 = vmatprep.subr.mxu0 0.0
    %124 = vmatpush1.msra.mxu0 0.0
    %125 = vmatprep.subr.mxu0 0.0
    %126 = vmatpush1.msra.mxu0 0.0
    %127 = vmatprep.subr.mxu0 0.0
    %128 = vmatpush1.msra.mxu0 0.0
    %129 = vmatprep.subr.mxu0 0.0
    %130 = vmatpush1.msra.mxu0 0.0
    %131 = vmatprep.subr.mxu0 0.0
    %132 = vmatpush1.msra.mxu0 0.0
    %133 = vmatprep.subr.mxu0 0.0
    %134 = vmatpush1.msra.mxu0 0.0
    %135 = vmatprep.subr.mxu0 0.0
    %136 = vmatpush1.msra.mxu0 0.0
    %137 = vmatprep.subr.mxu0 0.0
    %138 = vmatpush1.msra.mxu0 0.0
    %139 = vmatprep.subr.mxu0 0.0
    %140 = vmatpush1.msra.mxu0 0.0
    %141 = vmatprep.subr.mxu0 0.0
    %142 = vmatpush1.msra.mxu0 0.0
    %143 = vmatprep.mubr.f32.mxu0 0.0
    %144 = vmatmul.mubr.f32.gmra.mrb[0].mxu0 %v62
    %v145 = vpop.f32.mrb[0].mxu0
    %v146 = vadd.f32 0.0, %v145
    %v147 = vpop.f32.mrb[0].mxu0
    %148 = vdwg.mxu0
    %v149 = vadd.f32 %v58, %v146
    %150 = vst [vmem:[#allocation2] sm:$0xff] %v149
    // Predicated region
    $region30: #{lambda_module_forward.1} parent=1 // pred_check
      %p151 = pneg %p52
    $region31: #{lambda_module_forward.1} parent=1 // pred_check_branch
      %153 = sbr.rel (%p151) target = $region33
    $region32: #{lambda_module_forward.1} parent=1 // pred_region
      %s154 = smul.u32 0, 128
      %s155 = sshra.s32 %s154, 7
      %s156 = sand.u32 %s154, 127
      %s157 = scalar_lea.vmem [#allocation3], %s155
      %v158 = vld [vmem:[%s157] sm:$0xff]
      %v159 = vld [vmem:[#allocation2] sm:$0xff]
      %v160 = vadd.f32 %v159, %v158
      %v161 = vld [vmem:[#allocation8] sm:$0x1]
      %v163 = vlaneseq
      %v164 = vshrl.u32 %v163, 7
      %v165 = vsub.s32 0, %v164
      %v166 = vrot.slane %v161, %v165
      %v168 = vadd.f32 %v160, %v166
      %169 = vst [vmem:[#allocation9] sm:$0xff] %v168
    $region33: #{lambda_module_forward.1} parent=1 // pred_fallthru
      _
    // Predicated region
    $region34: #{lambda_module_forward.1} parent=1 // pred_check
      _
    $region35: #{lambda_module_forward.1} parent=1 // pred_check_branch
      %171 = sbr.rel (0) target = $region37
    $region36: #{lambda_module_forward.1} parent=1 // pred_region
      %s173 = ssub.s32 128, 128
      %174 = vsyncadd [#allocation5], %s173
      %s176 = sshll.u32 [#allocation9], 4
      %s177 = int_to_ptr.vmem [resolvable:$true] %s176
      %179 = dma.vmem_to_hbm [thread:$0]  %s177, 128, %s3, [#allocation5]
    $region37: #{lambda_module_forward.1} parent=1 // pred_fallthru
      _
    // Predicated region
    $region38: #{lambda_module_forward.1} parent=1 // pred_check
      _
    $region39: #{lambda_module_forward.1} parent=1 // pred_check_branch
      %181 = sbr.rel (0) target = $region41
    $region40: #{lambda_module_forward.1} parent=1 // pred_region
      %182 = dma.done [#allocation5], 128
    $region41: #{lambda_module_forward.1} parent=1 // pred_fallthru
      _
    %183 = vsyncpa [#allocation4], 1
    %184 = vsyncpa [#allocation7], 1
    %185 = vsyncpa [#allocation5], 1

</llo_original>
